<compile_context>
chip_gen: v6e
topology: v6e:2x2x1
jax: 0.10.0
libtpu: 0.0.40
codegen_flags: <defaults>
</compile_context>

<pallas_src>
import math
from functools import partial

import jax
import jax.numpy as jnp
from jax.experimental import pallas as pl
from jax.experimental.pallas import tpu as pltpu


def _round_up(x, m):
    return (x + m - 1) // m * m


# ----------------------------------------------------------------------------
# Kernel 1: pixel normalization  (x - mean) * (1/std) on NCHW data flattened
# to (N*C, H*W): spatial axis is lane-dense, no NHWC transpose, no divide.
# ----------------------------------------------------------------------------
def _preprocess_kernel(img_ref, mean_ref, istd_ref, out_ref):
    out_ref[...] = (img_ref[...] - mean_ref[...]) * istd_ref[...]


def preprocess_image(images_nchw, pixel_mean, pixel_std, tile=512):
    n, c, h, w = images_nchw.shape
    hw = h * w
    x = images_nchw.reshape(n * c, hw)
    mean = jnp.tile(pixel_mean.astype(jnp.float32), n).reshape(n * c, 1)
    istd = jnp.tile((1.0 / pixel_std).astype(jnp.float32), n).reshape(n * c, 1)
    if hw % tile != 0:
        tile = hw  # small images: single lane-dense block
    return pl.pallas_call(
        _preprocess_kernel,
        out_shape=jax.ShapeDtypeStruct((n * c, hw), jnp.float32),
        grid=(hw // tile,),
        in_specs=[
            pl.BlockSpec((n * c, tile), lambda j: (0, j)),
            pl.BlockSpec((n * c, 1), lambda j: (0, 0)),
            pl.BlockSpec((n * c, 1), lambda j: (0, 0)),
        ],
        out_specs=pl.BlockSpec((n * c, tile), lambda j: (0, j)),
        compiler_params=pltpu.CompilerParams(
            dimension_semantics=("parallel",)),
    )(x, mean, istd).reshape(n, c, h, w)


# ----------------------------------------------------------------------------
# Kernel 2: fused RetinaNetHead for one FPN level (both branches together).
# ----------------------------------------------------------------------------
def _head_kernel(x_ref, sub_w_ref, sub_b_ref, head_w_ref, head_b_ref,
                 out_ref, act_ref, patch_ref,
                 *, H, W, C, num_convs, pad_top, base):
    HW = H * W
    Ca = 2 * C
    hwp = act_ref.shape[0]

    # Left/right image-border masks: flattened row shifts wrap across image
    # rows for the dw=0 / dw=2 taps; those wrapped rows must contribute zero.
    w_idx = jax.lax.broadcasted_iota(jnp.int32, (HW, 1), 0) % W
    not_left = (w_idx != 0).astype(jnp.float32)
    not_right = (w_idx != (W - 1)).astype(jnp.float32)

    # Zero only the halo rows (interior is fully overwritten below).  Done
    # every grid step so the scratch stays valid under "parallel" semantics
    # (megacore may run a step on a core that never executed program_id 0).
    act_ref[0:pad_top, :] = jnp.zeros((pad_top, Ca), jnp.float32)
    act_ref[pad_top + HW:hwp, :] = jnp.zeros((hwp - pad_top - HW, Ca),
                                             jnp.float32)

    # Stage the level feature into both branch halves: [cls | bbox] = [x | x].
    x = x_ref[0]                                           # (HW, C) f32
    act_ref[pad_top:pad_top + HW, :] = jnp.concatenate([x, x], axis=1)

    def tap_block(t):
        # One im2col tap: row-shifted slice of the flat activation, border
        # masked, cast to bf16 (so the patch store/load traffic is half-width
        # and the matmul operand is already MXU-ready).
        dh, dw = divmod(t, 3)
        s = base + dh * W + dw
        blk = act_ref[s:s + HW, :]
        if dw == 0:
            blk = blk * not_left
        elif dw == 2:
            blk = blk * not_right
        return blk.astype(jnp.bfloat16)

    def build_patch():
        # im2col: (HW, 9*Ca) bf16 patch.  Taps are stored in 128-lane pairs
        # (aligned, unmasked vst) plus one trailing 64-lane store for tap 8.
        for p in range(4):
            patch_ref[:, (2 * p) * Ca:(2 * p + 2) * Ca] = jnp.concatenate(
                [tap_block(2 * p), tap_block(2 * p + 1)], axis=1)
        patch_ref[:, 8 * Ca:9 * Ca] = tap_block(8)

    for l in range(num_convs):
        build_patch()
        # One K=9*Ca matmul per fused subnet layer (bf16 x bf16 -> f32).
        y = jnp.dot(patch_ref[...], sub_w_ref[l],
                    preferred_element_type=jnp.float32)
        y = jnp.maximum(y + sub_b_ref[l], 0.0)             # bias + ReLU in f32
        act_ref[pad_top:pad_top + HW, :] = y

    # Fused cls_score / bbox_pred head: one matmul into a 128-lane slab.
    build_patch()
    out = jnp.dot(patch_ref[...], head_w_ref[...],
                  preferred_element_type=jnp.float32)
    out_ref[0] = out + head_b_ref[...]


def retinanet_head_level(x_nchw, packed, num_convs):
    """x_nchw: (N, C, H, W). Returns (logits NHW(AK), bbox NHW(A4)) in NHWC."""
    N, C, H, W = x_nchw.shape
    HW = H * W
    Ca = 2 * C
    AK, A4, co_pad = packed["AK"], packed["A4"], packed["co_pad"]

    # NCHW -> N(HW)C: channels on lanes, flattened spatial rows on sublanes.
    x2 = jnp.transpose(x_nchw, (0, 2, 3, 1)).reshape(N, HW, C)

    pad_top = _round_up(W + 1, 8)                # 8-aligned interior start
    base = pad_top - (W + 1)
    hwp = _round_up(pad_top + HW + W + 1, 8)     # top + interior + bottom halo

    kernel = partial(_head_kernel, H=H, W=W, C=C, num_convs=num_convs,
                     pad_top=pad_top, base=base)

    def full_spec(shape):
        nd = len(shape)
        return pl.BlockSpec(shape, lambda n, _nd=nd: (0,) * _nd)

    # TODO(synk): at production FPN resolutions (e.g. 100x152 @ C=256) tile H
    # into row strips with a 1-row halo (grid=(N, H//tile_h)) and re-derive
    # the VMEM budget (v7x: 64 MiB physical / 32 MiB default scoped limit).
    out = pl.pallas_call(
        kernel,
        out_shape=jax.ShapeDtypeStruct((N, HW, co_pad), jnp.float32),
        grid=(N,),
        in_specs=[
            pl.BlockSpec((1, HW, C), lambda n: (n, 0, 0)),
            full_spec(packed["sub_w"].shape),
            full_spec(packed["sub_b"].shape),
            full_spec(packed["head_w"].shape),
            full_spec(packed["head_b"].shape),
        ],
        out_specs=pl.BlockSpec((1, HW, co_pad), lambda n: (n, 0, 0)),
        scratch_shapes=[
            pltpu.VMEM((hwp, Ca), jnp.float32),       # halo-padded activations
            pltpu.VMEM((HW, 9 * Ca), jnp.bfloat16),   # im2col patch matrix
        ],
        compiler_params=pltpu.CompilerParams(
            dimension_semantics=("parallel",)),       # N images -> v7x 2 TCs
    )(x2, packed["sub_w"], packed["sub_b"], packed["head_w"], packed["head_b"])

    logits = out[:, :, :AK].reshape(N, H, W, AK)
    bbox = out[:, :, AK:AK + A4].reshape(N, H, W, A4)
    return logits, bbox


def permute_to_N_HWA_K(x_nhwc, K):
    """NHWC output with channels = A*K (A outer, K inner) -> (N, H*W*A, K)."""
    N, H, W, AK = x_nhwc.shape
    return x_nhwc.reshape(N, H * W * (AK // K), K)


# ----------------------------------------------------------------------------
# Parameter init (RetinaNetHead.__init__ semantics: weights ~ N(0, 0.01),
# biases = 0, cls_score bias = -log((1-p)/p)).  Stored in HWIO per layer.
# ----------------------------------------------------------------------------
def init_head_params(key, C, num_convs, num_anchors, num_classes,
                     prior_prob=0.01):
    k0, k1, k2, k3 = jax.random.split(key, 4)
    std = 0.01
    AK, A4 = num_anchors * num_classes, num_anchors * 4
    bias_value = -math.log((1.0 - prior_prob) / prior_prob)
    return {
        "cls_w": std * jax.random.normal(k0, (num_convs, 3, 3, C, C), jnp.float32),
        "cls_b": jnp.zeros((num_convs, C), jnp.float32),
        "bbox_w": std * jax.random.normal(k1, (num_convs, 3, 3, C, C), jnp.float32),
        "bbox_b": jnp.zeros((num_convs, C), jnp.float32),
        "score_w": std * jax.random.normal(k2, (3, 3, C, AK), jnp.float32),
        "score_b": jnp.full((AK,), bias_value, jnp.float32),
        "pred_w": std * jax.random.normal(k3, (3, 3, C, A4), jnp.float32),
        "pred_b": jnp.zeros((A4,), jnp.float32),
    }


def pack_head_params(params, C, num_convs):
    """Pack branch-separate HWIO weights into fused, bf16, im2col layouts."""
    Ca = 2 * C
    AK = params["score_w"].shape[-1]
    A4 = params["pred_w"].shape[-1]
    co_pad = max(128, _round_up(AK + A4, 128))   # lane-dense output slab

    cls_w = params["cls_w"].reshape(num_convs, 9, C, C)
    bbox_w = params["bbox_w"].reshape(num_convs, 9, C, C)
    # Block-diagonal fused subnet weight: cls half never mixes with bbox half.
    sub_w = jnp.zeros((num_convs, 9, Ca, Ca), jnp.float32)
    sub_w = sub_w.at[:, :, :C, :C].set(cls_w)
    sub_w = sub_w.at[:, :, C:, C:].set(bbox_w)
    sub_w = sub_w.reshape(num_convs, 9 * Ca, Ca).astype(jnp.bfloat16)

    sub_b = jnp.concatenate([params["cls_b"], params["bbox_b"]],
                            axis=1).reshape(num_convs, 1, Ca)

    head_w = jnp.zeros((9, Ca, co_pad), jnp.float32)
    head_w = head_w.at[:, :C, :AK].set(params["score_w"].reshape(9, C, AK))
    head_w = head_w.at[:, C:, AK:AK + A4].set(params["pred_w"].reshape(9, C, A4))
    head_w = head_w.reshape(9 * Ca, co_pad).astype(jnp.bfloat16)

    head_b = jnp.zeros((1, co_pad), jnp.float32)
    head_b = head_b.at[0, :AK].set(params["score_b"])
    head_b = head_b.at[0, AK:AK + A4].set(params["pred_b"])

    return {"sub_w": sub_w, "sub_b": sub_b, "head_w": head_w,
            "head_b": head_b, "AK": AK, "A4": A4, "co_pad": co_pad}


# ----------------------------------------------------------------------------
# Pure-JAX reference (lax.conv) used for a correctness check of the kernel.
# ----------------------------------------------------------------------------
def _conv3x3_ref(x_nhwc, w_hwio, b):
    y = jax.lax.conv_general_dilated(
        x_nhwc, w_hwio, window_strides=(1, 1), padding="SAME",
        dimension_numbers=("NHWC", "HWIO", "NHWC"))
    return y + b.reshape(1, 1, 1, -1)


def head_level_ref(x_nchw, params, num_convs):
    x = jnp.transpose(x_nchw, (0, 2, 3, 1))
    h = x
    for l in range(num_convs):
        h = jax.nn.relu(_conv3x3_ref(h, params["cls_w"][l], params["cls_b"][l]))
    logits = _conv3x3_ref(h, params["score_w"], params["score_b"])
    h = x
    for l in range(num_convs):
        h = jax.nn.relu(_conv3x3_ref(h, params["bbox_w"][l], params["bbox_b"][l]))
    bbox = _conv3x3_ref(h, params["pred_w"], params["pred_b"])
    return logits, bbox


if __name__ == "__main__":
    key = jax.random.PRNGKey(0)
    k_img, k_f2, k_f3, k_par = jax.random.split(key, 4)

    # Model hyperparams (small, synthetic).
    C = 32            # FPN out channels
    num_convs = 2     # head conv depth
    num_anchors = 3
    num_classes = 16  # label alphabet size

    # preprocess_image path (backbone itself is TODO(synk)).
    images = jax.random.normal(k_img, (2, 3, 32, 32), jnp.float32)  # NCHW
    pixel_mean = jnp.array([103.53, 116.28, 123.675], jnp.float32)
    pixel_std = jnp.array([1.0, 1.0, 1.0], jnp.float32)
    normed = preprocess_image(images, pixel_mean, pixel_std)
    jax.block_until_ready(normed)
    ref_norm = (images - pixel_mean.reshape(1, 3, 1, 1)) / pixel_std.reshape(1, 3, 1, 1)
    assert jnp.allclose(normed, ref_norm, atol=1e-5, rtol=1e-5), "preprocess mismatch"

    # Synthetic FPN features (what self.fpn(...) would produce), NCHW.
    features = [
        jax.random.normal(k_f2, (2, C, 16, 16), jnp.float32),  # P2-like
        jax.random.normal(k_f3, (2, C, 8, 8), jnp.float32),    # P3-like
    ]
    params = init_head_params(k_par, C, num_convs, num_anchors, num_classes)
    packed = pack_head_params(params, C, num_convs)

    pred_logits, pred_deltas = [], []
    for feat in features:
        logits, bbox = retinanet_head_level(feat, packed, num_convs)
        jax.block_until_ready((logits, bbox))

        # Correctness check against a pure-JAX f32 reference (kernel uses bf16
        # matmul operands with f32 accumulation).
        ref_logits, ref_bbox = head_level_ref(feat, params, num_convs)
        assert jnp.allclose(logits, ref_logits, atol=2e-2, rtol=2e-2), "logits mismatch"
        assert jnp.allclose(bbox, ref_bbox, atol=2e-2, rtol=2e-2), "bbox mismatch"

        pred_logits.append(permute_to_N_HWA_K(logits, K=num_classes))
        pred_deltas.append(permute_to_N_HWA_K(bbox, K=4))

    # Shapes: (N, Hi*Wi*A, K) and (N, Hi*Wi*A, 4), as in the PyTorch module.
    assert pred_logits[0].shape == (2, 16 * 16 * num_anchors, num_classes)
    assert pred_deltas[1].shape == (2, 8 * 8 * num_anchors, 4)

    jax.block_until_ready((pred_logits, pred_deltas))
    # TODO(synk): anchor generation, focal/smooth-L1 losses and top-k+NMS
    # inference have no clean Pallas equivalent here and are omitted.
    print("KERNEL_OK")
</pallas_src>

<mosaic_0001>
module attributes {stable_mosaic.version = 11 : i64} {
  func.func @_preprocess_kernel(%arg0: i32, %arg1: memref<6x512xf32, #tpu.memory_space<vmem>>, %arg2: memref<6x1xf32, #tpu.memory_space<vmem>>, %arg3: memref<6x1xf32, #tpu.memory_space<vmem>>, %arg4: memref<6x512xf32, #tpu.memory_space<vmem>>) attributes {dimension_semantics = [#tpu.dimension_semantics<parallel>], iteration_bounds = array<i64: 2>, scalar_prefetch = 0 : i64, scratch_operands = 0 : i64, tpu.core_type = #tpu.core_type<tc>, window_params = [{transform_indices = @transform_0, window_bounds = array<i64: 6, 512>}, {pipeline_mode = #tpu.pipeline_mode<synchronous>, transform_indices = @transform_1, window_bounds = array<i64: 6, 1>}, {pipeline_mode = #tpu.pipeline_mode<synchronous>, transform_indices = @transform_2, window_bounds = array<i64: 6, 1>}, {transform_indices = @transform_3, window_bounds = array<i64: 6, 512>}]} {
    %c0 = arith.constant 0 : index
    %c0_0 = arith.constant 0 : index
    %0 = vector.load %arg1[%c0, %c0_0] : memref<6x512xf32, #tpu.memory_space<vmem>>, vector<6x512xf32>
    %c0_1 = arith.constant 0 : index
    %c0_2 = arith.constant 0 : index
    %1 = vector.load %arg2[%c0_1, %c0_2] : memref<6x1xf32, #tpu.memory_space<vmem>>, vector<6x1xf32>
    %2 = vector.broadcast %1 : vector<6x1xf32> to vector<6x512xf32>
    %3 = arith.subf %0, %2 : vector<6x512xf32>
    %c0_3 = arith.constant 0 : index
    %c0_4 = arith.constant 0 : index
    %4 = vector.load %arg3[%c0_3, %c0_4] : memref<6x1xf32, #tpu.memory_space<vmem>>, vector<6x1xf32>
    %5 = vector.broadcast %4 : vector<6x1xf32> to vector<6x512xf32>
    %6 = arith.mulf %3, %5 : vector<6x512xf32>
    %c0_5 = arith.constant 0 : index
    %c0_6 = arith.constant 0 : index
    %7 = vector.load %arg4[%c0_5, %c0_6] : memref<6x512xf32, #tpu.memory_space<vmem>>, vector<6x512xf32>
    tpu.vector_store %arg4[%c0_5, %c0_6], %6 {strides = array<i32>} : memref<6x512xf32, #tpu.memory_space<vmem>>, vector<6x512xf32>,
    return
  }
  func.func @transform_0(%arg0: i32) -> (i32, i32) {
    %c0_i32 = arith.constant 0 : i32
    %c0_i32_0 = arith.constant 0 : i32
    return %c0_i32, %arg0 : i32, i32
  }
  func.func @transform_1(%arg0: i32) -> (i32, i32) {
    %c0_i32 = arith.constant 0 : i32
    %c0_i32_0 = arith.constant 0 : i32
    %c0_i32_1 = arith.constant 0 : i32
    return %c0_i32, %c0_i32_0 : i32, i32
  }
  func.func @transform_2(%arg0: i32) -> (i32, i32) {
    %c0_i32 = arith.constant 0 : i32
    %c0_i32_0 = arith.constant 0 : i32
    %c0_i32_1 = arith.constant 0 : i32
    return %c0_i32, %c0_i32_0 : i32, i32
  }
  func.func @transform_3(%arg0: i32) -> (i32, i32) {
    %c0_i32 = arith.constant 0 : i32
    %c0_i32_0 = arith.constant 0 : i32
    return %c0_i32, %arg0 : i32, i32
  }
}

</mosaic_0001>

<llo_original>
// kernel: tpu_custom_call.1
$region0: #{tpu_custom_call.1}
  #allocation0 [shape = 'u32[]', space=smem, size = 0x4, offset = 0x4, fixed_abs, tag = 'smem constant byte address 0x4 - core index']
  #allocation1 [shape = 'u32[144,128]{1,0:T(1,128)}', space=vmem, size = 0x12000, scoped, tag = 'internal scratch']
  %s0 = inlined_call_operand.hbm [shape: f32[6,1024], index: 0, kind: input, shape index: {}]
  %s1 = inlined_call_operand.vmem [shape: f32[6,1], index: 1, kind: input, shape index: {}]
  %s2 = inlined_call_operand.vmem [shape: f32[6,1], index: 2, kind: input, shape index: {}]
  %s3 = inlined_call_operand.hbm [shape: f32[6,1024], index: 3, kind: output, shape index: {}]
  %s4 = sld [smem:[#allocation0]]
  $region49: #{tpu_custom_call.1} parent=0
    _
  %s6 = ssub.s32 1, %s4
  %s7 = scalar_select 0, %s6, %s4
  $region1: #{tpu_custom_call.1} parent=0
    #allocation2 [shape = 'u8[32768]{0}', space=vmem, size = 0x8000, scoped, tag = 'input window, operand 0']
    #allocation3 [shape = 's32[2]{0}', space=sflag, size = 0x8, scoped, tag = 'scoped memory for tpu_custom_call.1']
    #allocation4 [shape = 's32[2]{0}', space=sflag, size = 0x8, scoped, tag = 'scoped memory for tpu_custom_call.1']
    #allocation5 [shape = 'u8[32768]{0}', space=vmem, size = 0x8000, scoped, tag = 'output window, operand 0']
    %8 = vsyncpa [#allocation3], 0
    %s9 = scalar_lea.sflag [#allocation3], 1
    %10 = vsyncpa %s9, 0
    %11 = vsyncpa [#allocation4], 0
    %s12 = scalar_lea.sflag [#allocation4], 1
    %13 = vsyncpa %s12, 0
    loop: start=0, step=1, limit=4
    $region2: #{tpu_custom_call.1} parent=1 // loop_pre_header
      _
    $region3: #{tpu_custom_call.1} parent=1 // loop_header
      %s15 = sphi 0, %s19
      %p16 = scmp.ge.s32.totalorder %s15, 4
      %s25 = sphi 0, %s27
      %s28 = sphi 0, %s25
      %s29 = sphi 0, %s28
      %s45 = sphi 0, %s29
      %s49 = sphi 0, %s49
      %s51 = sphi 0, %s49
      %s52 = sphi 0, %s51
      %s66 = sphi 0, %s52
      %s70 = sphi 0, %s70
      %s72 = sphi 0, %s70
      %s73 = sphi 0, %s72
      %s87 = sphi 0, %s73
      %s93 = sphi 0, %s95
      %s96 = sphi 0, %s93
      %s97 = sphi 0, %s96
      %s113 = sphi 0, %s97
    $region4: #{tpu_custom_call.1} parent=1 // loop_header_branch
      %18 = sbr.rel (%p16) target = $region8
    $region5: #{tpu_custom_call.1} parent=1 // loop_body
      %s20 = ssub.s32 %s15, 1
      %s21 = ssub.s32 %s15, 2
      %s22 = sadd.s32 %s15, 1
      %s23 = ssub.s32 %s15, %s22
      %p24 = scmp.eq.s32.totalorder %s23, 0
      %s26 = sadd.s32 %s25, 1
      %s27 = scalar_select %p24, %s25, %s26
      %p30 = pneg %p24
      %p31 = scmp.eq.s32.totalorder %s15, 1
      %p32 = por %p30, %p31
      %p33 = scmp.ne.s32.totalorder %s25, %s28
      %p34 = scmp.eq.s32.totalorder %s15, 0
      %p35 = por %p33, %p34
      %p36 = scmp.ne.s32.totalorder %s25, %s28
      %p37 = scmp.eq.s32.totalorder %s20, 1
      %p38 = por %p36, %p37
      %p39 = scmp.ne.s32.totalorder %s28, %s29
      %p40 = scmp.eq.s32.totalorder %s20, 0
      %p41 = por %p39, %p40
      %p42 = scmp.ne.s32.totalorder %s28, %s29
      %p43 = scmp.eq.s32.totalorder %s21, 1
      %p44 = por %p42, %p43
      %p46 = scmp.ne.s32.totalorder %s29, %s45
      %p47 = scmp.eq.s32.totalorder %s21, 0
      %p48 = por %p46, %p47
      %s50 = sadd.s32 %s49, 1
      %p53 = scmp.eq.s32.totalorder %s15, 1
      %p54 = scmp.ne.s32.totalorder %s49, %s51
      %p55 = scmp.eq.s32.totalorder %s15, 0
      %p56 = por %p54, %p55
      %p57 = scmp.ne.s32.totalorder %s49, %s51
      %p58 = scmp.eq.s32.totalorder %s20, 1
      %p59 = por %p57, %p58
      %p60 = scmp.ne.s32.totalorder %s51, %s52
      %p61 = scmp.eq.s32.totalorder %s20, 0
      %p62 = por %p60, %p61
      %p63 = scmp.ne.s32.totalorder %s51, %s52
      %p64 = scmp.eq.s32.totalorder %s21, 1
      %p65 = por %p63, %p64
      %p67 = scmp.ne.s32.totalorder %s52, %s66
      %p68 = scmp.eq.s32.totalorder %s21, 0
      %p69 = por %p67, %p68
      %s71 = sadd.s32 %s70, 1
      %p74 = scmp.eq.s32.totalorder %s15, 1
      %p75 = scmp.ne.s32.totalorder %s70, %s72
      %p76 = scmp.eq.s32.totalorder %s15, 0
      %p77 = por %p75, %p76
      %p78 = scmp.ne.s32.totalorder %s70, %s72
      %p79 = scmp.eq.s32.totalorder %s20, 1
      %p80 = por %p78, %p79
      %p81 = scmp.ne.s32.totalorder %s72, %s73
      %p82 = scmp.eq.s32.totalorder %s20, 0
      %p83 = por %p81, %p82
      %p84 = scmp.ne.s32.totalorder %s72, %s73
      %p85 = scmp.eq.s32.totalorder %s21, 1
      %p86 = por %p84, %p85
      %p88 = scmp.ne.s32.totalorder %s73, %s87
      %p89 = scmp.eq.s32.totalorder %s21, 0
      %p90 = por %p88, %p89
      %s91 = ssub.s32 %s15, %s22
      %p92 = scmp.eq.s32.totalorder %s91, 0
      %s94 = sadd.s32 %s93, 1
      %s95 = scalar_select %p92, %s93, %s94
      %p98 = pneg %p92
      %p99 = scmp.eq.s32.totalorder %s15, 1
      %p100 = por %p98, %p99
      %p101 = scmp.ne.s32.totalorder %s93, %s96
      %p102 = scmp.eq.s32.totalorder %s15, 0
      %p103 = por %p101, %p102
      %p104 = scmp.ne.s32.totalorder %s93, %s96
      %p105 = scmp.eq.s32.totalorder %s20, 1
      %p106 = por %p104, %p105
      %p107 = scmp.ne.s32.totalorder %s96, %s97
      %p108 = scmp.eq.s32.totalorder %s20, 0
      %p109 = por %p107, %p108
      %p110 = scmp.ne.s32.totalorder %s96, %s97
      %p111 = scmp.eq.s32.totalorder %s21, 1
      %p112 = por %p110, %p111
      %p114 = scmp.ne.s32.totalorder %s97, %s113
      %p115 = scmp.eq.s32.totalorder %s21, 0
      %p116 = por %p114, %p115
      %p117 = scmp.le.s32.totalorder 1, %s15
      %p118 = scmp.lt.s32.totalorder %s15, 3
      %p119 = pnand %p117, %p118
      %p120 = pneg %p119
      // Predicated region
      $region9: #{tpu_custom_call.1} parent=5 // pred_check
        _
      $region10: #{tpu_custom_call.1} parent=5 // pred_check_branch
        %122 = sbr.rel (%p119) target = $region12
      $region11: #{tpu_custom_call.1} parent=5 // pred_region
        %s123 = ssub.s32 %s15, 1
        // Predicated region
        $region13: #{tpu_custom_call.1} parent=11 // pred_check
          %p124 = pneg %p62
        $region14: #{tpu_custom_call.1} parent=11 // pred_check_branch
          %126 = sbr.rel (%p124) target = $region16
        $region15: #{tpu_custom_call.1} parent=11 // pred_region
          _
        $region16: #{tpu_custom_call.1} parent=11 // pred_fallthru
          _
        // Predicated region
        $region17: #{tpu_custom_call.1} parent=11 // pred_check
          %p127 = pneg %p83
        $region18: #{tpu_custom_call.1} parent=11 // pred_check_branch
          %129 = sbr.rel (%p127) target = $region20
        $region19: #{tpu_custom_call.1} parent=11 // pred_region
          _
        $region20: #{tpu_custom_call.1} parent=11 // pred_fallthru
          _
      $region12: #{tpu_custom_call.1} parent=5 // pred_fallthru
        _
      %p130 = scmp.lt.s32.totalorder %s15, 2
      // Predicated region
      $region21: #{tpu_custom_call.1} parent=5 // pred_check
        %p131 = pneg %p130
      $region22: #{tpu_custom_call.1} parent=5 // pred_check_branch
        %133 = sbr.rel (%p131) target = $region24
      $region23: #{tpu_custom_call.1} parent=5 // pred_region
        // Predicated region
        $region25: #{tpu_custom_call.1} parent=23 // pred_check
          %p134 = pneg %p35
        $region26: #{tpu_custom_call.1} parent=23 // pred_check_branch
          %136 = sbr.rel (%p134) target = $region28
        $region27: #{tpu_custom_call.1} parent=23 // pred_region
          %s137 = sand.u32 %s25, 1
          %s138 = scalar_lea.sflag [#allocation3], %s137
          %s139 = sand.u32 %s25, 1
          %s140 = smul.addr %s139, 32
          %s141 = scalar_lea.vmem [#allocation2], %s140
          %s142 = smul.u32 4, %s15
          %s144 = ssub.s32 512, 512
          %145 = vsyncadd %s138, %s144
          %s146 = smul.addr %s142, 128
          %s147 = scalar_lea.hbm %s0, %s146
          %s149 = sshll.u32 %s141, 4
          %s150 = int_to_ptr.vmem [resolvable:$true] %s149
          %152 = dma.hbm_to_vmem [thread:$0]  %s147, 512, %s150, %s138
        $region28: #{tpu_custom_call.1} parent=23 // pred_fallthru
          _
      $region24: #{tpu_custom_call.1} parent=5 // pred_fallthru
        _
      %p153 = scmp.le.s32.totalorder 1, %s15
      %p154 = scmp.lt.s32.totalorder %s15, 3
      %p155 = pnand %p153, %p154
      %p156 = pneg %p155
      // Predicated region
      $region29: #{tpu_custom_call.1} parent=5 // pred_check
        _
      $region30: #{tpu_custom_call.1} parent=5 // pred_check_branch
        %158 = sbr.rel (%p155) target = $region32
      $region31: #{tpu_custom_call.1} parent=5 // pred_region
        %s159 = ssub.s32 %s15, 1
        %s160 = sand.u32 %s28, 1
        %s161 = scalar_lea.sflag [#allocation3], %s160
        %s162 = sand.u32 %s28, 1
        %s163 = smul.addr %s162, 32
        %s164 = scalar_lea.vmem [#allocation2], %s163
        // Predicated region
        $region33: #{tpu_custom_call.1} parent=31 // pred_check
          %p165 = pneg %p41
        $region34: #{tpu_custom_call.1} parent=31 // pred_check_branch
          %167 = sbr.rel (%p165) target = $region36
        $region35: #{tpu_custom_call.1} parent=31 // pred_region
          %168 = dma.done %s161, 512
        $region36: #{tpu_custom_call.1} parent=31 // pred_fallthru
          _
        %s169 = sand.u32 %s28, 1
        %s170 = scalar_lea.sflag [#allocation3], %s169
        %s171 = sand.u32 %s28, 1
        %s172 = smul.addr %s171, 32
        %s173 = scalar_lea.vmem [#allocation2], %s172
        %p174 = pneg %p41
        %p175 = pneg %p38
        %p176 = pneg %p62
        %p177 = pneg %p59
        %p178 = pneg %p83
        %p179 = pneg %p80
        %p180 = pneg %p109
        %p181 = pneg %p106
        %s182 = sand.u32 %s96, 1
        %s183 = scalar_lea.sflag [#allocation4], %s182
        %s184 = sand.u32 %s96, 1
        %s185 = smul.addr %s184, 32
        %s186 = scalar_lea.vmem [#allocation5], %s185
        %s187 = smul.u32 4, %s20
        %s188 = smul.u32 4, %s20
        %v189 = vld [vmem:[%s164] sm:$0x3f]
        %v190 = vld [vmem:[%s164 + $0x8] sm:$0x3f]
        %v191 = vld [vmem:[%s164 + $0x10] sm:$0x3f]
        %v192 = vld [vmem:[%s164 + $0x18] sm:$0x3f]
        %v193 = vld [vmem:[%s1] sm:$0x3f]
        %195 = vset.pattern.permute.xlu0 0
        %196 = vperm.xlu0 %195, %v193
        %v197 = vpop.permute.xlu0 %196
        %v199 = vsub.f32 %v189, %v197
        %v200 = vsub.f32 %v190, %v197
        %v201 = vsub.f32 %v191, %v197
        %v202 = vsub.f32 %v192, %v197
        %v203 = vld [vmem:[%s2] sm:$0x3f]
        %205 = vset.pattern.permute.xlu0 0
        %206 = vperm.xlu0 %205, %v203
        %v207 = vpop.permute.xlu0 %206
        %v209 = vmul.f32 %v199, %v207
        %v210 = vmul.f32 %v200, %v207
        %v211 = vmul.f32 %v201, %v207
        %v212 = vmul.f32 %v202, %v207
        %213 = vst [vmem:[%s186] sm:$0x3f] %v209
        %214 = vst [vmem:[%s186 + $0x8] sm:$0x3f] %v210
        %215 = vst [vmem:[%s186 + $0x10] sm:$0x3f] %v211
        %216 = vst [vmem:[%s186 + $0x18] sm:$0x3f] %v212
        %s217 = sand.u32 %s96, 1
        %s218 = scalar_lea.sflag [#allocation4], %s217
        %s219 = sand.u32 %s96, 1
        %s220 = smul.addr %s219, 32
        %s221 = scalar_lea.vmem [#allocation5], %s220
        // Predicated region
        $region37: #{tpu_custom_call.1} parent=31 // pred_check
          %p222 = pneg %p106
        $region38: #{tpu_custom_call.1} parent=31 // pred_check_branch
          %224 = sbr.rel (%p222) target = $region40
        $region39: #{tpu_custom_call.1} parent=31 // pred_region
          %s225 = smul.u32 4, %s20
          %s227 = ssub.s32 512, 512
          %228 = vsyncadd %s218, %s227
          %s229 = smul.addr %s225, 128
          %s230 = scalar_lea.hbm %s3, %s229
          %s232 = sshll.u32 %s221, 4
          %s233 = int_to_ptr.vmem [resolvable:$true] %s232
          %235 = dma.vmem_to_hbm [thread:$0]  %s233, 512, %s230, %s218
        $region40: #{tpu_custom_call.1} parent=31 // pred_fallthru
          _
      $region32: #{tpu_custom_call.1} parent=5 // pred_fallthru
        _
      %p236 = scmp.le.s32.totalorder 2, %s15
      // Predicated region
      $region41: #{tpu_custom_call.1} parent=5 // pred_check
        %p237 = pneg %p236
      $region42: #{tpu_custom_call.1} parent=5 // pred_check_branch
        %239 = sbr.rel (%p237) target = $region44
      $region43: #{tpu_custom_call.1} parent=5 // pred_region
        %s240 = ssub.s32 %s15, 2
        // Predicated region
        $region45: #{tpu_custom_call.1} parent=43 // pred_check
          %p241 = pneg %p112
        $region46: #{tpu_custom_call.1} parent=43 // pred_check_branch
          %243 = sbr.rel (%p241) target = $region48
        $region47: #{tpu_custom_call.1} parent=43 // pred_region
          %s244 = sand.u32 %s97, 1
          %s245 = scalar_lea.sflag [#allocation4], %s244
          %s246 = sand.u32 %s97, 1
          %s247 = smul.addr %s246, 32
          %s248 = scalar_lea.vmem [#allocation5], %s247
          %249 = dma.done %s245, 512
        $region48: #{tpu_custom_call.1} parent=43 // pred_fallthru
          _
      $region44: #{tpu_custom_call.1} parent=5 // pred_fallthru
        _
    $region6: #{tpu_custom_call.1} parent=1 // loop_footer
      %s19 = sadd.s32 1, %s15
    $region7: #{tpu_custom_call.1} parent=1 // loop_footer_branch
      %14 = sbr.rel target = $region3
    $region8: #{tpu_custom_call.1} parent=1 // loop_exit
      _
    %250 = vsyncpa [#allocation3], 1
    %s251 = scalar_lea.sflag [#allocation3], 1
    %252 = vsyncpa %s251, 1
    %253 = vsyncpa [#allocation4], 1
    %s254 = scalar_lea.sflag [#allocation4], 1
    %255 = vsyncpa %s254, 1

</llo_original>
